<compile_context>
chip_gen: v7x
topology: tpu7x:2x2x1
jax: 0.10.0
libtpu: 0.0.40
codegen_flags: <defaults>
</compile_context>

<pallas_src>
import jax
import jax.numpy as jnp
from jax.experimental import pallas as pl
from jax.experimental.pallas import tpu as pltpu

EPS = 1e-5  # torch BatchNorm1d default eps

# Problem dimensions / packed-slab layout (static, all row offsets 8-aligned).
SRC, HID, TGT = 64, 32, 16
PW = 128                      # padded lane width (full vreg lane count)
R_W1 = 0                      # W1: [SRC, PW]  (real [SRC, HID] in cols :HID)
R_W2 = R_W1 + SRC             # W2: [PW,  PW]  (real [HID, TGT] in [:HID, :TGT])
R_W3 = R_W2 + PW              # W3: [PW,  PW]  (real [TGT, HID] in [:TGT, :HID])
R_W4 = R_W3 + PW              # W4: [PW,  PW]  (real [HID, SRC] in [:HID, :SRC])
R_B = R_W4 + PW               # biases: 8 rows; rows 0..3 = b1,b2,b3,b4
R_TOTAL = R_B + 8             # 456 rows (multiple of 8)


def _batchnorm1d(v):
    # nn.BatchNorm1d(affine=False), training-mode batch stats, single pass:
    # E[x] and E[x^2] together; variance clamped at 0 to guard f32 cancellation
    # before rsqrt.
    inv_n = 1.0 / v.shape[0]
    m = jnp.sum(v, axis=0, keepdims=True) * inv_n
    ms = jnp.sum(v * v, axis=0, keepdims=True) * inv_n
    var = jnp.maximum(ms - m * m, 0.0)
    return (v - m) * jax.lax.rsqrt(var + EPS)


def _erf(x):
    # Abramowitz & Stegun 7.1.26 rational approximation, |err| <= 1.5e-7.
    a1, a2, a3, a4, a5 = (0.254829592, -0.284496736, 1.421413741,
                          -1.453152027, 1.061405429)
    p = 0.3275911
    s = jnp.where(x >= 0.0, 1.0, -1.0)
    ax = jnp.abs(x)
    t = 1.0 / (1.0 + p * ax)
    poly = ((((a5 * t + a4) * t + a3) * t + a2) * t + a1) * t
    return s * (1.0 - poly * jnp.exp(-ax * ax))


def _gelu_exact(x):
    # nn.GELU() default (erf form).
    return 0.5 * x * (1.0 + _erf(x * 0.7071067811865476))


def info_distillation_kernel(x_ref, p_ref, d_ref, mse_ref):
    x = x_ref[...]                               # [N, SRC]

    # Static, 8-aligned slices of the single packed parameter slab.
    w1 = p_ref[R_W1:R_W1 + SRC, :]               # [SRC, PW]
    w2 = p_ref[R_W2:R_W2 + PW, :]                # [PW,  PW]
    w3 = p_ref[R_W3:R_W3 + PW, :]                # [PW,  PW]
    w4 = p_ref[R_W4:R_W4 + PW, :]                # [PW,  PW]
    bias = p_ref[R_B:R_B + 8, :]                 # [8,   PW]
    b1 = bias[0:1, :]
    b2 = bias[1:2, :]
    b3 = bias[2:3, :]
    b4 = bias[3:4, :]

    # dropout -> eval-mode identity (see TODO above); bn_s(dropout(x)).
    h = _batchnorm1d(x)

    # down_sampling: Linear(SRC, HID) -> BN -> GELU -> Linear(HID, TGT)
    # (computed at padded 128-lane width; padded columns stay exactly zero)
    h1 = jnp.dot(h, w1, preferred_element_type=jnp.float32) + b1     # [N, PW]
    g1 = _gelu_exact(_batchnorm1d(h1))
    d_x = jnp.dot(g1, w2, preferred_element_type=jnp.float32) + b2   # [N, PW]

    # softmax=False, Up=True branch: first return value is sigmoid(bn_t(d_x)).
    d_ref[...] = jax.nn.sigmoid(_batchnorm1d(d_x))[:, :TGT]

    # up_sampling acts on the *pre* bn_t / sigmoid d_x.
    u1 = jnp.dot(d_x, w3, preferred_element_type=jnp.float32) + b3   # [N, PW]
    g2 = _gelu_exact(_batchnorm1d(u1))
    u_x = jnp.dot(g2, w4, preferred_element_type=jnp.float32) + b4   # [N, PW]

    diff = u_x[:, :SRC] - x
    # MSELoss(reduction='mean') -> scalar, stored directly in SMEM.
    mse_ref[0, 0] = jnp.mean(diff * diff)


def pack_params(w1, b1, w2, b2, w3, b3, w4, b4):
    """Pack all Linear weights/biases into one lane-dense [R_TOTAL, 128] slab.

    Weights are [in, out] (pre-transposed vs torch), biases are 1-D [out].
    Padding rows/columns are zero so padded-width compute is exact.
    """
    slab = jnp.zeros((R_TOTAL, PW), jnp.float32)
    slab = slab.at[R_W1:R_W1 + SRC, :HID].set(w1)
    slab = slab.at[R_W2:R_W2 + HID, :TGT].set(w2)
    slab = slab.at[R_W3:R_W3 + TGT, :HID].set(w3)
    slab = slab.at[R_W4:R_W4 + HID, :SRC].set(w4)
    slab = slab.at[R_B + 0, :HID].set(b1)
    slab = slab.at[R_B + 1, :TGT].set(b2)
    slab = slab.at[R_B + 2, :HID].set(b3)
    slab = slab.at[R_B + 3, :SRC].set(b4)
    return slab


def info_distillation(x, packed_params):
    """x: [N, SRC] f32. Returns (sigmoid(bn_t(d_x)) [N, TGT], mse scalar)."""
    n = x.shape[0]
    d, mse = pl.pallas_call(
        info_distillation_kernel,
        out_shape=(
            jax.ShapeDtypeStruct((n, TGT), jnp.float32),
            jax.ShapeDtypeStruct((1, 1), jnp.float32),
        ),
        in_specs=[
            pl.BlockSpec(memory_space=pltpu.MemorySpace.VMEM),   # x
            pl.BlockSpec(memory_space=pltpu.MemorySpace.VMEM),   # packed params
        ],
        out_specs=(
            pl.BlockSpec(memory_space=pltpu.MemorySpace.VMEM),   # d
            pl.BlockSpec(memory_space=pltpu.MemorySpace.SMEM),   # scalar mse
        ),
    )(x, packed_params)
    return d, mse[0, 0]


def _init_linear(kw, kb, fan_in, fan_out):
    # torch nn.Linear default init: U(-1/sqrt(fan_in), 1/sqrt(fan_in)).
    bound = 1.0 / (fan_in ** 0.5)
    w = jax.random.uniform(kw, (fan_in, fan_out), jnp.float32, -bound, bound)
    b = jax.random.uniform(kb, (fan_out,), jnp.float32, -bound, bound)
    return w, b


def _reference(x, w1, b1, w2, b2, w3, b3, w4, b4):
    # Pure-JAX reference of the same forward (eval-mode dropout, batch-stat BN).
    def bn(v):
        m = jnp.mean(v, axis=0, keepdims=True)
        var = jnp.mean((v - m) ** 2, axis=0, keepdims=True)
        return (v - m) / jnp.sqrt(var + EPS)

    def gelu(v):
        return 0.5 * v * (1.0 + jax.lax.erf(v * 0.7071067811865476))

    h = bn(x)
    h1 = gelu(bn(h @ w1 + b1))
    d_x = h1 @ w2 + b2
    d = jax.nn.sigmoid(bn(d_x))
    u1 = gelu(bn(d_x @ w3 + b3))
    u_x = u1 @ w4 + b4
    mse = jnp.mean((u_x - x) ** 2)
    return d, mse


if __name__ == "__main__":
    key = jax.random.PRNGKey(0)
    n = 16

    ks = jax.random.split(key, 9)
    w1, b1 = _init_linear(ks[0], ks[1], SRC, HID)   # down: Linear 1
    w2, b2 = _init_linear(ks[2], ks[3], HID, TGT)   # down: Linear 2
    w3, b3 = _init_linear(ks[4], ks[5], TGT, HID)   # up:   Linear 1
    w4, b4 = _init_linear(ks[6], ks[7], HID, SRC)   # up:   Linear 2
    x = jax.random.normal(ks[8], (n, SRC), jnp.float32)

    packed = pack_params(w1, b1, w2, b2, w3, b3, w4, b4)

    d, mse = info_distillation(x, packed)
    jax.block_until_ready((d, mse))

    # Sanity + numerical check against the pure-JAX reference (generous
    # tolerance: MXU f32 matmul passes differ slightly from XLA's).
    assert d.shape == (n, TGT) and mse.shape == ()
    assert bool(jnp.all(jnp.isfinite(d))) and bool(jnp.isfinite(mse))
    d_ref, mse_ref = _reference(x, w1, b1, w2, b2, w3, b3, w4, b4)
    assert float(jnp.max(jnp.abs(d - d_ref))) < 2e-2
    assert abs(float(mse) - float(mse_ref)) < 5e-2 * max(1.0, float(mse_ref))

    print("KERNEL_OK")
</pallas_src>

<mosaic_0001>
module attributes {stable_mosaic.version = 11 : i64} {
  func.func @info_distillation_kernel(%arg0: memref<16x64xf32, #tpu.memory_space<vmem>>, %arg1: memref<456x128xf32, #tpu.memory_space<vmem>>, %arg2: memref<16x16xf32, #tpu.memory_space<vmem>>, %arg3: memref<1x1xf32, #tpu.memory_space<smem>>) attributes {dimension_semantics = [], scalar_prefetch = 0 : i64, scratch_operands = 0 : i64, tpu.core_type = #tpu.core_type<tc>} {
    %c0 = arith.constant 0 : index
    %c0_0 = arith.constant 0 : index
    %0 = vector.load %arg0[%c0, %c0_0] : memref<16x64xf32, #tpu.memory_space<vmem>>, vector<16x64xf32>
    %c0_1 = arith.constant 0 : index
    %c0_2 = arith.constant 0 : index
    %1 = vector.load %arg1[%c0_1, %c0_2] : memref<456x128xf32, #tpu.memory_space<vmem>>, vector<64x128xf32>
    %c64 = arith.constant 64 : index
    %c0_3 = arith.constant 0 : index
    %2 = vector.load %arg1[%c64, %c0_3] : memref<456x128xf32, #tpu.memory_space<vmem>>, vector<128x128xf32>
    %c192 = arith.constant 192 : index
    %c0_4 = arith.constant 0 : index
    %3 = vector.load %arg1[%c192, %c0_4] : memref<456x128xf32, #tpu.memory_space<vmem>>, vector<128x128xf32>
    %c320 = arith.constant 320 : index
    %c0_5 = arith.constant 0 : index
    %4 = vector.load %arg1[%c320, %c0_5] : memref<456x128xf32, #tpu.memory_space<vmem>>, vector<128x128xf32>
    %c448 = arith.constant 448 : index
    %c0_6 = arith.constant 0 : index
    %5 = vector.load %arg1[%c448, %c0_6] : memref<456x128xf32, #tpu.memory_space<vmem>>, vector<8x128xf32>
    %6 = vector.extract_strided_slice %5 {offsets = [0, 0], sizes = [1, 128], strides = [1, 1]} : vector<8x128xf32> to vector<1x128xf32>
    %7 = vector.extract_strided_slice %5 {offsets = [1, 0], sizes = [1, 128], strides = [1, 1]} : vector<8x128xf32> to vector<1x128xf32>
    %8 = vector.extract_strided_slice %5 {offsets = [2, 0], sizes = [1, 128], strides = [1, 1]} : vector<8x128xf32> to vector<1x128xf32>
    %9 = vector.extract_strided_slice %5 {offsets = [3, 0], sizes = [1, 128], strides = [1, 1]} : vector<8x128xf32> to vector<1x128xf32>
    %cst = arith.constant dense<0.000000e+00> : vector<64xf32>
    %10 = vector.multi_reduction <add>, %0, %cst [0] : vector<16x64xf32> to vector<64xf32>
    %11 = vector.shape_cast %10 : vector<64xf32> to vector<1x64xf32>
    %cst_7 = arith.constant 6.250000e-02 : f32
    %12 = vector.broadcast %cst_7 : f32 to vector<1x64xf32>
    %13 = arith.mulf %11, %12 : vector<1x64xf32>
    %14 = arith.mulf %0, %0 : vector<16x64xf32>
    %cst_8 = arith.constant dense<0.000000e+00> : vector<64xf32>
    %15 = vector.multi_reduction <add>, %14, %cst_8 [0] : vector<16x64xf32> to vector<64xf32>
    %16 = vector.shape_cast %15 : vector<64xf32> to vector<1x64xf32>
    %cst_9 = arith.constant 6.250000e-02 : f32
    %17 = vector.broadcast %cst_9 : f32 to vector<1x64xf32>
    %18 = arith.mulf %16, %17 : vector<1x64xf32>
    %19 = arith.mulf %13, %13 : vector<1x64xf32>
    %20 = arith.subf %18, %19 : vector<1x64xf32>
    %cst_10 = arith.constant 0.000000e+00 : f32
    %21 = vector.broadcast %cst_10 : f32 to vector<1x64xf32>
    %22 = arith.maximumf %20, %21 : vector<1x64xf32>
    %23 = vector.broadcast %13 : vector<1x64xf32> to vector<16x64xf32>
    %24 = arith.subf %0, %23 : vector<16x64xf32>
    %cst_11 = arith.constant 9.99999974E-6 : f32
    %25 = vector.broadcast %cst_11 : f32 to vector<1x64xf32>
    %26 = arith.addf %22, %25 : vector<1x64xf32>
    %27 = math.rsqrt %26 : vector<1x64xf32>
    %28 = vector.broadcast %27 : vector<1x64xf32> to vector<16x64xf32>
    %29 = arith.mulf %24, %28 : vector<16x64xf32>
    %cst_12 = arith.constant dense<0.000000e+00> : vector<16x128xf32>
    %30 = tpu.matmul %29, %1, %cst_12 {dimension_numbers = #tpu.dot_dimension_numbers<[1], [0], [0], [1], [0, 0, 1, 1], [], []>} : vector<16x64xf32>, vector<64x128xf32>, vector<16x128xf32> -> vector<16x128xf32>
    %31 = vector.broadcast %6 : vector<1x128xf32> to vector<16x128xf32>
    %32 = arith.addf %30, %31 : vector<16x128xf32>
    %cst_13 = arith.constant dense<0.000000e+00> : vector<128xf32>
    %33 = vector.multi_reduction <add>, %32, %cst_13 [0] : vector<16x128xf32> to vector<128xf32>
    %34 = vector.shape_cast %33 : vector<128xf32> to vector<1x128xf32>
    %cst_14 = arith.constant 6.250000e-02 : f32
    %35 = vector.broadcast %cst_14 : f32 to vector<1x128xf32>
    %36 = arith.mulf %34, %35 : vector<1x128xf32>
    %37 = arith.mulf %32, %32 : vector<16x128xf32>
    %cst_15 = arith.constant dense<0.000000e+00> : vector<128xf32>
    %38 = vector.multi_reduction <add>, %37, %cst_15 [0] : vector<16x128xf32> to vector<128xf32>
    %39 = vector.shape_cast %38 : vector<128xf32> to vector<1x128xf32>
    %cst_16 = arith.constant 6.250000e-02 : f32
    %40 = vector.broadcast %cst_16 : f32 to vector<1x128xf32>
    %41 = arith.mulf %39, %40 : vector<1x128xf32>
    %42 = arith.mulf %36, %36 : vector<1x128xf32>
    %43 = arith.subf %41, %42 : vector<1x128xf32>
    %cst_17 = arith.constant 0.000000e+00 : f32
    %44 = vector.broadcast %cst_17 : f32 to vector<1x128xf32>
    %45 = arith.maximumf %43, %44 : vector<1x128xf32>
    %46 = vector.broadcast %36 : vector<1x128xf32> to vector<16x128xf32>
    %47 = arith.subf %32, %46 : vector<16x128xf32>
    %cst_18 = arith.constant 9.99999974E-6 : f32
    %48 = vector.broadcast %cst_18 : f32 to vector<1x128xf32>
    %49 = arith.addf %45, %48 : vector<1x128xf32>
    %50 = math.rsqrt %49 : vector<1x128xf32>
    %51 = vector.broadcast %50 : vector<1x128xf32> to vector<16x128xf32>
    %52 = arith.mulf %47, %51 : vector<16x128xf32>
    %cst_19 = arith.constant 5.000000e-01 : f32
    %53 = vector.broadcast %cst_19 : f32 to vector<16x128xf32>
    %54 = arith.mulf %53, %52 : vector<16x128xf32>
    %cst_20 = arith.constant 0.707106769 : f32
    %55 = vector.broadcast %cst_20 : f32 to vector<16x128xf32>
    %56 = arith.mulf %52, %55 : vector<16x128xf32>
    %cst_21 = arith.constant 0.000000e+00 : f32
    %57 = vector.broadcast %cst_21 : f32 to vector<16x128xf32>
    %58 = arith.cmpf oge, %56, %57 : vector<16x128xf32>
    %cst_22 = arith.constant 1.000000e+00 : f32
    %cst_23 = arith.constant -1.000000e+00 : f32
    %59 = vector.broadcast %cst_22 : f32 to vector<16x128xf32>
    %60 = vector.broadcast %cst_23 : f32 to vector<16x128xf32>
    %61 = arith.select %58, %59, %60 : vector<16x128xi1>, vector<16x128xf32>
    %62 = math.absf %56 : vector<16x128xf32>
    %cst_24 = arith.constant 0.327591091 : f32
    %63 = vector.broadcast %cst_24 : f32 to vector<16x128xf32>
    %64 = arith.mulf %63, %62 : vector<16x128xf32>
    %cst_25 = arith.constant 1.000000e+00 : f32
    %65 = vector.broadcast %cst_25 : f32 to vector<16x128xf32>
    %66 = arith.addf %65, %64 : vector<16x128xf32>
    %cst_26 = arith.constant 1.000000e+00 : f32
    %67 = vector.broadcast %cst_26 : f32 to vector<16x128xf32>
    %68 = arith.divf %67, %66 : vector<16x128xf32>
    %cst_27 = arith.constant 1.06140542 : f32
    %69 = vector.broadcast %cst_27 : f32 to vector<16x128xf32>
    %70 = arith.mulf %69, %68 : vector<16x128xf32>
    %cst_28 = arith.constant -1.45315206 : f32
    %71 = vector.broadcast %cst_28 : f32 to vector<16x128xf32>
    %72 = arith.addf %70, %71 : vector<16x128xf32>
    %73 = arith.mulf %72, %68 : vector<16x128xf32>
    %cst_29 = arith.constant 1.42141378 : f32
    %74 = vector.broadcast %cst_29 : f32 to vector<16x128xf32>
    %75 = arith.addf %73, %74 : vector<16x128xf32>
    %76 = arith.mulf %75, %68 : vector<16x128xf32>
    %cst_30 = arith.constant -0.284496725 : f32
    %77 = vector.broadcast %cst_30 : f32 to vector<16x128xf32>
    %78 = arith.addf %76, %77 : vector<16x128xf32>
    %79 = arith.mulf %78, %68 : vector<16x128xf32>
    %cst_31 = arith.constant 0.254829586 : f32
    %80 = vector.broadcast %cst_31 : f32 to vector<16x128xf32>
    %81 = arith.addf %79, %80 : vector<16x128xf32>
    %82 = arith.mulf %81, %68 : vector<16x128xf32>
    %cst_32 = arith.constant 0.000000e+00 : f32
    %83 = vector.broadcast %cst_32 : f32 to vector<16x128xf32>
    %84 = arith.subf %83, %62 : vector<16x128xf32>
    %85 = arith.mulf %84, %62 : vector<16x128xf32>
    %86 = math.exp %85 : vector<16x128xf32>
    %87 = arith.mulf %82, %86 : vector<16x128xf32>
    %cst_33 = arith.constant 1.000000e+00 : f32
    %88 = vector.broadcast %cst_33 : f32 to vector<16x128xf32>
    %89 = arith.subf %88, %87 : vector<16x128xf32>
    %90 = arith.mulf %61, %89 : vector<16x128xf32>
    %cst_34 = arith.constant 1.000000e+00 : f32
    %91 = vector.broadcast %cst_34 : f32 to vector<16x128xf32>
    %92 = arith.addf %91, %90 : vector<16x128xf32>
    %93 = arith.mulf %54, %92 : vector<16x128xf32>
    %cst_35 = arith.constant dense<0.000000e+00> : vector<16x128xf32>
    %94 = tpu.matmul %93, %2, %cst_35 {dimension_numbers = #tpu.dot_dimension_numbers<[1], [0], [0], [1], [0, 0, 1, 1], [], []>} : vector<16x128xf32>, vector<128x128xf32>, vector<16x128xf32> -> vector<16x128xf32>
    %95 = vector.broadcast %7 : vector<1x128xf32> to vector<16x128xf32>
    %96 = arith.addf %94, %95 : vector<16x128xf32>
    %cst_36 = arith.constant dense<0.000000e+00> : vector<128xf32>
    %97 = vector.multi_reduction <add>, %96, %cst_36 [0] : vector<16x128xf32> to vector<128xf32>
    %98 = vector.shape_cast %97 : vector<128xf32> to vector<1x128xf32>
    %cst_37 = arith.constant 6.250000e-02 : f32
    %99 = vector.broadcast %cst_37 : f32 to vector<1x128xf32>
    %100 = arith.mulf %98, %99 : vector<1x128xf32>
    %101 = arith.mulf %96, %96 : vector<16x128xf32>
    %cst_38 = arith.constant dense<0.000000e+00> : vector<128xf32>
    %102 = vector.multi_reduction <add>, %101, %cst_38 [0] : vector<16x128xf32> to vector<128xf32>
    %103 = vector.shape_cast %102 : vector<128xf32> to vector<1x128xf32>
    %cst_39 = arith.constant 6.250000e-02 : f32
    %104 = vector.broadcast %cst_39 : f32 to vector<1x128xf32>
    %105 = arith.mulf %103, %104 : vector<1x128xf32>
    %106 = arith.mulf %100, %100 : vector<1x128xf32>
    %107 = arith.subf %105, %106 : vector<1x128xf32>
    %cst_40 = arith.constant 0.000000e+00 : f32
    %108 = vector.broadcast %cst_40 : f32 to vector<1x128xf32>
    %109 = arith.maximumf %107, %108 : vector<1x128xf32>
    %110 = vector.broadcast %100 : vector<1x128xf32> to vector<16x128xf32>
    %111 = arith.subf %96, %110 : vector<16x128xf32>
    %cst_41 = arith.constant 9.99999974E-6 : f32
    %112 = vector.broadcast %cst_41 : f32 to vector<1x128xf32>
    %113 = arith.addf %109, %112 : vector<1x128xf32>
    %114 = math.rsqrt %113 : vector<1x128xf32>
    %115 = vector.broadcast %114 : vector<1x128xf32> to vector<16x128xf32>
    %116 = arith.mulf %111, %115 : vector<16x128xf32>
    %117 = arith.negf %116 : vector<16x128xf32>
    %118 = math.exp %117 : vector<16x128xf32>
    %cst_42 = arith.constant 1.000000e+00 : f32
    %119 = vector.broadcast %cst_42 : f32 to vector<16x128xf32>
    %120 = arith.addf %119, %118 : vector<16x128xf32>
    %121 = arith.divf %119, %120 : vector<16x128xf32>
    %122 = vector.extract_strided_slice %121 {offsets = [0, 0], sizes = [16, 16], strides = [1, 1]} : vector<16x128xf32> to vector<16x16xf32>
    %c0_43 = arith.constant 0 : index
    %c0_44 = arith.constant 0 : index
    %123 = vector.load %arg2[%c0_43, %c0_44] : memref<16x16xf32, #tpu.memory_space<vmem>>, vector<16x16xf32>
    tpu.vector_store %arg2[%c0_43, %c0_44], %122 {strides = array<i32>} : memref<16x16xf32, #tpu.memory_space<vmem>>, vector<16x16xf32>,
    %cst_45 = arith.constant dense<0.000000e+00> : vector<16x128xf32>
    %124 = tpu.matmul %96, %3, %cst_45 {dimension_numbers = #tpu.dot_dimension_numbers<[1], [0], [0], [1], [0, 0, 1, 1], [], []>} : vector<16x128xf32>, vector<128x128xf32>, vector<16x128xf32> -> vector<16x128xf32>
    %125 = vector.broadcast %8 : vector<1x128xf32> to vector<16x128xf32>
    %126 = arith.addf %124, %125 : vector<16x128xf32>
    %cst_46 = arith.constant dense<0.000000e+00> : vector<128xf32>
    %127 = vector.multi_reduction <add>, %126, %cst_46 [0] : vector<16x128xf32> to vector<128xf32>
    %128 = vector.shape_cast %127 : vector<128xf32> to vector<1x128xf32>
    %cst_47 = arith.constant 6.250000e-02 : f32
    %129 = vector.broadcast %cst_47 : f32 to vector<1x128xf32>
    %130 = arith.mulf %128, %129 : vector<1x128xf32>
    %131 = arith.mulf %126, %126 : vector<16x128xf32>
    %cst_48 = arith.constant dense<0.000000e+00> : vector<128xf32>
    %132 = vector.multi_reduction <add>, %131, %cst_48 [0] : vector<16x128xf32> to vector<128xf32>
    %133 = vector.shape_cast %132 : vector<128xf32> to vector<1x128xf32>
    %cst_49 = arith.constant 6.250000e-02 : f32
    %134 = vector.broadcast %cst_49 : f32 to vector<1x128xf32>
    %135 = arith.mulf %133, %134 : vector<1x128xf32>
    %136 = arith.mulf %130, %130 : vector<1x128xf32>
    %137 = arith.subf %135, %136 : vector<1x128xf32>
    %cst_50 = arith.constant 0.000000e+00 : f32
    %138 = vector.broadcast %cst_50 : f32 to vector<1x128xf32>
    %139 = arith.maximumf %137, %138 : vector<1x128xf32>
    %140 = vector.broadcast %130 : vector<1x128xf32> to vector<16x128xf32>
    %141 = arith.subf %126, %140 : vector<16x128xf32>
    %cst_51 = arith.constant 9.99999974E-6 : f32
    %142 = vector.broadcast %cst_51 : f32 to vector<1x128xf32>
    %143 = arith.addf %139, %142 : vector<1x128xf32>
    %144 = math.rsqrt %143 : vector<1x128xf32>
    %145 = vector.broadcast %144 : vector<1x128xf32> to vector<16x128xf32>
    %146 = arith.mulf %141, %145 : vector<16x128xf32>
    %cst_52 = arith.constant 5.000000e-01 : f32
    %147 = vector.broadcast %cst_52 : f32 to vector<16x128xf32>
    %148 = arith.mulf %147, %146 : vector<16x128xf32>
    %cst_53 = arith.constant 0.707106769 : f32
    %149 = vector.broadcast %cst_53 : f32 to vector<16x128xf32>
    %150 = arith.mulf %146, %149 : vector<16x128xf32>
    %cst_54 = arith.constant 0.000000e+00 : f32
    %151 = vector.broadcast %cst_54 : f32 to vector<16x128xf32>
    %152 = arith.cmpf oge, %150, %151 : vector<16x128xf32>
    %cst_55 = arith.constant 1.000000e+00 : f32
    %cst_56 = arith.constant -1.000000e+00 : f32
    %153 = vector.broadcast %cst_55 : f32 to vector<16x128xf32>
    %154 = vector.broadcast %cst_56 : f32 to vector<16x128xf32>
    %155 = arith.select %152, %153, %154 : vector<16x128xi1>, vector<16x128xf32>
    %156 = math.absf %150 : vector<16x128xf32>
    %cst_57 = arith.constant 0.327591091 : f32
    %157 = vector.broadcast %cst_57 : f32 to vector<16x128xf32>
    %158 = arith.mulf %157, %156 : vector<16x128xf32>
    %cst_58 = arith.constant 1.000000e+00 : f32
    %159 = vector.broadcast %cst_58 : f32 to vector<16x128xf32>
    %160 = arith.addf %159, %158 : vector<16x128xf32>
    %cst_59 = arith.constant 1.000000e+00 : f32
    %161 = vector.broadcast %cst_59 : f32 to vector<16x128xf32>
    %162 = arith.divf %161, %160 : vector<16x128xf32>
    %cst_60 = arith.constant 1.06140542 : f32
    %163 = vector.broadcast %cst_60 : f32 to vector<16x128xf32>
    %164 = arith.mulf %163, %162 : vector<16x128xf32>
    %cst_61 = arith.constant -1.45315206 : f32
    %165 = vector.broadcast %cst_61 : f32 to vector<16x128xf32>
    %166 = arith.addf %164, %165 : vector<16x128xf32>
    %167 = arith.mulf %166, %162 : vector<16x128xf32>
    %cst_62 = arith.constant 1.42141378 : f32
    %168 = vector.broadcast %cst_62 : f32 to vector<16x128xf32>
    %169 = arith.addf %167, %168 : vector<16x128xf32>
    %170 = arith.mulf %169, %162 : vector<16x128xf32>
    %cst_63 = arith.constant -0.284496725 : f32
    %171 = vector.broadcast %cst_63 : f32 to vector<16x128xf32>
    %172 = arith.addf %170, %171 : vector<16x128xf32>
    %173 = arith.mulf %172, %162 : vector<16x128xf32>
    %cst_64 = arith.constant 0.254829586 : f32
    %174 = vector.broadcast %cst_64 : f32 to vector<16x128xf32>
    %175 = arith.addf %173, %174 : vector<16x128xf32>
    %176 = arith.mulf %175, %162 : vector<16x128xf32>
    %cst_65 = arith.constant 0.000000e+00 : f32
    %177 = vector.broadcast %cst_65 : f32 to vector<16x128xf32>
    %178 = arith.subf %177, %156 : vector<16x128xf32>
    %179 = arith.mulf %178, %156 : vector<16x128xf32>
    %180 = math.exp %179 : vector<16x128xf32>
    %181 = arith.mulf %176, %180 : vector<16x128xf32>
    %cst_66 = arith.constant 1.000000e+00 : f32
    %182 = vector.broadcast %cst_66 : f32 to vector<16x128xf32>
    %183 = arith.subf %182, %181 : vector<16x128xf32>
    %184 = arith.mulf %155, %183 : vector<16x128xf32>
    %cst_67 = arith.constant 1.000000e+00 : f32
    %185 = vector.broadcast %cst_67 : f32 to vector<16x128xf32>
    %186 = arith.addf %185, %184 : vector<16x128xf32>
    %187 = arith.mulf %148, %186 : vector<16x128xf32>
    %cst_68 = arith.constant dense<0.000000e+00> : vector<16x128xf32>
    %188 = tpu.matmul %187, %4, %cst_68 {dimension_numbers = #tpu.dot_dimension_numbers<[1], [0], [0], [1], [0, 0, 1, 1], [], []>} : vector<16x128xf32>, vector<128x128xf32>, vector<16x128xf32> -> vector<16x128xf32>
    %189 = vector.broadcast %9 : vector<1x128xf32> to vector<16x128xf32>
    %190 = arith.addf %188, %189 : vector<16x128xf32>
    %191 = vector.extract_strided_slice %190 {offsets = [0, 0], sizes = [16, 64], strides = [1, 1]} : vector<16x128xf32> to vector<16x64xf32>
    %192 = arith.subf %191, %0 : vector<16x64xf32>
    %193 = arith.mulf %192, %192 : vector<16x64xf32>
    %194 = vector.shape_cast %193 : vector<16x64xf32> to vector<1x16x64xf32>
    %cst_69 = arith.constant dense<0.000000e+00> : vector<1xf32>
    %195 = vector.multi_reduction <add>, %194, %cst_69 [1, 2] : vector<1x16x64xf32> to vector<1xf32>
    %196 = vector.shape_cast %195 : vector<1xf32> to vector<1x1x1xf32>
    %197 = vector.extract %196[0, 0, 0] : f32 from vector<1x1x1xf32>
    %cst_70 = arith.constant 1.024000e+03 : f32
    %198 = arith.divf %197, %cst_70 : f32
    %c0_71 = arith.constant 0 : index
    %c0_72 = arith.constant 0 : index
    %199 = memref.load %arg3[%c0_71, %c0_72] : memref<1x1xf32, #tpu.memory_space<smem>>
    memref.store %198, %arg3[%c0_71, %c0_72] : memref<1x1xf32, #tpu.memory_space<smem>>
    return
  }
}

</mosaic_0001>

<llo_original>
// kernel: tpu_custom_call.1
$region0: #{tpu_custom_call.1}
  #allocation0 [shape = 'u32[]', space=smem, size = 0x4, offset = 0x4, fixed_abs, tag = 'smem constant byte address 0x4 - core index']
  #allocation1 [shape = 'u32[144,128]{1,0:T(1,128)}', space=vmem, size = 0x12000, scoped, tag = 'internal scratch']
  %s0 = inlined_call_operand.hbm [shape: f32[16,64], index: 0, kind: input, shape index: {}]
  %s1 = inlined_call_operand.hbm [shape: f32[456,128], index: 1, kind: input, shape index: {}]
  %s2 = inlined_call_operand.hbm [shape: f32[16,16], index: 2, kind: output, shape index: {0}]
  %s3 = inlined_call_operand.hbm [shape: f32[1,1], index: 3, kind: output, shape index: {1}]
  %4 = xla_tuple %s2, %s3
  %s5 = sld [smem:[#allocation0]]
  $region34: #{tpu_custom_call.1} parent=0
    _
  %s7 = ssub.s32 1, %s5
  %s8 = scalar_select 0, %s7, %s5
  $region1: #{tpu_custom_call.1} parent=0
    #allocation2 [shape = 'u8[8192]{0}', space=vmem, size = 0x2000, scoped, tag = 'input window, operand 0, single buffered']
    #allocation3 [shape = 's32[1]{0}', space=sflag, size = 0x4, scoped, tag = 'scoped memory for tpu_custom_call.1']
    #allocation4 [shape = 's32[1]{0}', space=sflag, size = 0x4, scoped, tag = 'scoped memory for tpu_custom_call.1']
    #allocation5 [shape = 's32[1]{0}', space=sflag, size = 0x4, scoped, tag = 'scoped memory for tpu_custom_call.1']
    #allocation6 [shape = 'u8[233472]{0}', space=vmem, size = 0x39000, scoped, tag = 'input window, operand 1, single buffered']
    #allocation7 [shape = 's32[1]{0}', space=sflag, size = 0x4, scoped, tag = 'scoped memory for tpu_custom_call.1']
    #allocation8 [shape = 'u8[8192]{0}', space=vmem, size = 0x2000, scoped, tag = 'output window, operand 0, single buffered']
    #allocation9 [shape = 'u8[512]{0}', space=smem, size = 0x200, scoped, tag = 'output window, operand 1, single buffered']
    %9 = vsyncpa [#allocation3], 0
    %10 = vsyncpa [#allocation7], 0
    %11 = vsyncpa [#allocation4], 0
    %12 = vsyncpa [#allocation5], 0
    // Predicated region
    $region2: #{tpu_custom_call.1} parent=1 // pred_check
      _
    $region3: #{tpu_custom_call.1} parent=1 // pred_check_branch
      %14 = sbr.rel (0) target = $region5
    $region4: #{tpu_custom_call.1} parent=1 // pred_region
      %s16 = ssub.s32 256, 256
      %17 = vsyncadd [#allocation3], %s16
      %s18 = sshll.u32 [#allocation2], 4
      %s19 = int_to_ptr.vmem [resolvable:$true] %s18
      %24 = dma.hbm_to_vmem [thread:$0]  %s0, 256, %s19, [#allocation3], 128, 128, 8
    $region5: #{tpu_custom_call.1} parent=1 // pred_fallthru
      _
    // Predicated region
    $region6: #{tpu_custom_call.1} parent=1 // pred_check
      _
    $region7: #{tpu_custom_call.1} parent=1 // pred_check_branch
      %26 = sbr.rel (0) target = $region9
    $region8: #{tpu_custom_call.1} parent=1 // pred_region
      %s28 = ssub.s32 7296, 7296
      %29 = vsyncadd [#allocation7], %s28
      %s30 = sshll.u32 [#allocation6], 4
      %s31 = int_to_ptr.vmem [resolvable:$true] %s30
      %36 = dma.hbm_to_vmem [thread:$0]  %s1, 7296, %s31, [#allocation7], 128, 128, 8
    $region9: #{tpu_custom_call.1} parent=1 // pred_fallthru
      _
    // Predicated region
    $region10: #{tpu_custom_call.1} parent=1 // pred_check
      _
    $region11: #{tpu_custom_call.1} parent=1 // pred_check_branch
      %38 = sbr.rel (0) target = $region13
    $region12: #{tpu_custom_call.1} parent=1 // pred_region
      %39 = dma.done [#allocation3], 256
    $region13: #{tpu_custom_call.1} parent=1 // pred_fallthru
      _
    // Predicated region
    $region14: #{tpu_custom_call.1} parent=1 // pred_check
      _
    $region15: #{tpu_custom_call.1} parent=1 // pred_check_branch
      %41 = sbr.rel (0) target = $region17
    $region16: #{tpu_custom_call.1} parent=1 // pred_region
      %42 = dma.done [#allocation7], 7296
    $region17: #{tpu_custom_call.1} parent=1 // pred_fallthru
      _
    %v43 = vld [vmem:[#allocation2] sm:$0xff]
    %v44 = vld [vmem:[#allocation2 + $0x8] sm:$0xff]
    %v45 = vld [vmem:[#allocation6] sm:$0xff]
    %v46 = vld [vmem:[#allocation6 + $0x8] sm:$0xff]
    %v47 = vld [vmem:[#allocation6 + $0x10] sm:$0xff]
    %v48 = vld [vmem:[#allocation6 + $0x18] sm:$0xff]
    %v49 = vld [vmem:[#allocation6 + $0x20] sm:$0xff]
    %v50 = vld [vmem:[#allocation6 + $0x28] sm:$0xff]
    %v51 = vld [vmem:[#allocation6 + $0x30] sm:$0xff]
    %v52 = vld [vmem:[#allocation6 + $0x38] sm:$0xff]
    %v53 = vld [vmem:[#allocation6 + $0x40] sm:$0xff]
    %v54 = vld [vmem:[#allocation6 + $0x48] sm:$0xff]
    %v55 = vld [vmem:[#allocation6 + $0x50] sm:$0xff]
    %v56 = vld [vmem:[#allocation6 + $0x58] sm:$0xff]
    %v57 = vld [vmem:[#allocation6 + $0x60] sm:$0xff]
    %v58 = vld [vmem:[#allocation6 + $0x68] sm:$0xff]
    %v59 = vld [vmem:[#allocation6 + $0x70] sm:$0xff]
    %v60 = vld [vmem:[#allocation6 + $0x78] sm:$0xff]
    %v61 = vld [vmem:[#allocation6 + $0x80] sm:$0xff]
    %v62 = vld [vmem:[#allocation6 + $0x88] sm:$0xff]
    %v63 = vld [vmem:[#allocation6 + $0x90] sm:$0xff]
    %v64 = vld [vmem:[#allocation6 + $0x98] sm:$0xff]
    %v65 = vld [vmem:[#allocation6 + $0xa0] sm:$0xff]
    %v66 = vld [vmem:[#allocation6 + $0xa8] sm:$0xff]
    %v67 = vld [vmem:[#allocation6 + $0xb0] sm:$0xff]
    %v68 = vld [vmem:[#allocation6 + $0xb8] sm:$0xff]
    %v69 = vld [vmem:[#allocation6 + $0xc0] sm:$0xff]
    %v70 = vld [vmem:[#allocation6 + $0xc8] sm:$0xff]
    %v71 = vld [vmem:[#allocation6 + $0xd0] sm:$0xff]
    %v72 = vld [vmem:[#allocation6 + $0xd8] sm:$0xff]
    %v73 = vld [vmem:[#allocation6 + $0xe0] sm:$0xff]
    %v74 = vld [vmem:[#allocation6 + $0xe8] sm:$0xff]
    %v75 = vld [vmem:[#allocation6 + $0xf0] sm:$0xff]
    %v76 = vld [vmem:[#allocation6 + $0xf8] sm:$0xff]
    %v77 = vld [vmem:[#allocation6 + $0x100] sm:$0xff]
    %v78 = vld [vmem:[#allocation6 + $0x108] sm:$0xff]
    %v79 = vld [vmem:[#allocation6 + $0x110] sm:$0xff]
    %v80 = vld [vmem:[#allocation6 + $0x118] sm:$0xff]
    %v81 = vld [vmem:[#allocation6 + $0x120] sm:$0xff]
    %v82 = vld [vmem:[#allocation6 + $0x128] sm:$0xff]
    %v83 = vld [vmem:[#allocation6 + $0x130] sm:$0xff]
    %v84 = vld [vmem:[#allocation6 + $0x138] sm:$0xff]
    %v85 = vld [vmem:[#allocation6 + $0x140] sm:$0xff]
    %v86 = vld [vmem:[#allocation6 + $0x148] sm:$0xff]
    %v87 = vld [vmem:[#allocation6 + $0x150] sm:$0xff]
    %v88 = vld [vmem:[#allocation6 + $0x158] sm:$0xff]
    %v89 = vld [vmem:[#allocation6 + $0x160] sm:$0xff]
    %v90 = vld [vmem:[#allocation6 + $0x168] sm:$0xff]
    %v91 = vld [vmem:[#allocation6 + $0x170] sm:$0xff]
    %v92 = vld [vmem:[#allocation6 + $0x178] sm:$0xff]
    %v93 = vld [vmem:[#allocation6 + $0x180] sm:$0xff]
    %v94 = vld [vmem:[#allocation6 + $0x188] sm:$0xff]
    %v95 = vld [vmem:[#allocation6 + $0x190] sm:$0xff]
    %v96 = vld [vmem:[#allocation6 + $0x198] sm:$0xff]
    %v97 = vld [vmem:[#allocation6 + $0x1a0] sm:$0xff]
    %v98 = vld [vmem:[#allocation6 + $0x1a8] sm:$0xff]
    %v99 = vld [vmem:[#allocation6 + $0x1b0] sm:$0xff]
    %v100 = vld [vmem:[#allocation6 + $0x1b8] sm:$0xff]
    %v101 = vld [vmem:[#allocation6 + $0x1c0] sm:$0xff]
    %vm102 = vcmask 523264
    %v103 = vsel %vm102, %v43, 0.0
    %v104 = vsel %vm102, %v44, 0.0
    %v105 = vadd.f32 %v103, %v104
    %v106 = vrot.slane %v105, 4
    %v107 = vadd.f32 %v105, %v106
    %v108 = vrot.slane %v107, 2
    %v109 = vadd.f32 %v107, %v108
    %v110 = vrot.slane %v109, 1
    %v111 = vadd.f32 %v109, %v110
    %v112 = vmul.f32 %v111, 0.0625
    %v113 = vmul.f32 %v43, %v43
    %v114 = vmul.f32 %v44, %v44
    %v115 = vsel %vm102, %v113, 0.0
    %v116 = vsel %vm102, %v114, 0.0
    %v117 = vadd.f32 %v115, %v116
    %v118 = vrot.slane %v117, 4
    %v119 = vadd.f32 %v117, %v118
    %v120 = vrot.slane %v119, 2
    %v121 = vadd.f32 %v119, %v120
    %v122 = vrot.slane %v121, 1
    %v123 = vadd.f32 %v121, %v122
    %v124 = vmul.f32 %v123, 0.0625
    %v125 = vmul.f32 %v112, %v112
    %v126 = vsub.f32 %v124, %v125
    %v127 = vmax.f32 %v126, 0.0
    %v128 = vsub.f32 %v43, %v112
    %v129 = vsub.f32 %v44, %v112
    %v130 = vadd.f32 %v127, 1e-05
    %v131 = vrsqrt.pop %v130
    %v132 = vmul.f32 %v128, %v131
    %v133 = vmul.f32 %v129, %v131
    %v134 = vlaneseq
    %v135 = vshrl.u32 %v134, 7
    %v136 = vsub.s32 0, %v135
    %v137 = vrot.slane %v101, %v136
    %v139 = vsel %vm102, %v132, 0
    %v142 = vsel %vm102, %v133, 0
    %144 = vmatprep.subr.mxu0 0.0
    %145 = vmatpush1.msra.mxu0 %v45
    %146 = vmatprep.subr.mxu0 0.0
    %147 = vmatpush1.msra.mxu0 %v46
    %148 = vmatprep.subr.mxu0 0.0
    %149 = vmatpush1.msra.mxu0 %v47
    %150 = vmatprep.subr.mxu0 0.0
    %151 = vmatpush1.msra.mxu0 %v48
    %152 = vmatprep.subr.mxu0 0.0
    %153 = vmatpush1.msra.mxu0 %v49
    %154 = vmatprep.subr.mxu0 0.0
    %155 = vmatpush1.msra.mxu0 %v50
    %156 = vmatprep.subr.mxu0 0.0
    %157 = vmatpush1.msra.mxu0 %v51
    %158 = vmatprep.subr.mxu0 0.0
    %159 = vmatpush1.msra.mxu0 %v52
    %160 = vmatprep.subr.mxu0 0.0
    %161 = vmatpush1.msra.mxu0 0.0
    %162 = vmatprep.subr.mxu0 0.0
    %163 = vmatpush1.msra.mxu0 0.0
    %164 = vmatprep.subr.mxu0 0.0
    %165 = vmatpush1.msra.mxu0 0.0
    %166 = vmatprep.subr.mxu0 0.0
    %167 = vmatpush1.msra.mxu0 0.0
    %168 = vmatprep.subr.mxu0 0.0
    %169 = vmatpush1.msra.mxu0 0.0
    %170 = vmatprep.subr.mxu0 0.0
    %171 = vmatpush1.msra.mxu0 0.0
    %172 = vmatprep.subr.mxu0 0.0
    %173 = vmatpush1.msra.mxu0 0.0
    %174 = vmatprep.subr.mxu0 0.0
    %175 = vmatpush1.msra.mxu0 0.0
    %176 = vmatprep.subr.mxu0 0.0
    %177 = vmatpush1.msra.mxu0 0.0
    %178 = vmatprep.subr.mxu0 0.0
    %179 = vmatpush1.msra.mxu0 0.0
    %180 = vmatprep.subr.mxu0 0.0
    %181 = vmatpush1.msra.mxu0 0.0
    %182 = vmatprep.subr.mxu0 0.0
    %183 = vmatpush1.msra.mxu0 0.0
    %184 = vmatprep.subr.mxu0 0.0
    %185 = vmatpush1.msra.mxu0 0.0
    %186 = vmatprep.subr.mxu0 0.0
    %187 = vmatpush1.msra.mxu0 0.0
    %188 = vmatprep.subr.mxu0 0.0
    %189 = vmatpush1.msra.mxu0 0.0
    %190 = vmatprep.subr.mxu0 0.0
    %191 = vmatpush1.msra.mxu0 0.0
    %192 = vmatprep.subr.mxu0 0.0
    %193 = vmatpush1.msra.mxu0 0.0
    %194 = vmatprep.subr.mxu0 0.0
    %195 = vmatpush1.msra.mxu0 0.0
    %196 = vmatprep.subr.mxu0 0.0
    %197 = vmatpush1.msra.mxu0 0.0
    %198 = vmatprep.subr.mxu0 0.0
    %199 = vmatpush1.msra.mxu0 0.0
    %200 = vmatprep.subr.mxu0 0.0
    %201 = vmatpush1.msra.mxu0 0.0
    %202 = vmatprep.subr.mxu0 0.0
    %203 = vmatpush1.msra.mxu0 0.0
    %204 = vmatprep.subr.mxu0 0.0
    %205 = vmatpush1.msra.mxu0 0.0
    %206 = vmatprep.subr.mxu0 0.0
    %207 = vmatpush1.msra.mxu0 0.0
    %208 = vmatprep.mubr.f32.mxu0 0.0
    %209 = vmatmul.mubr.f32.gmra.mrb[0].mxu0 %v139
    %v210 = vpop.f32.mrb[0].mxu0
    %v211 = vadd.f32 %v137, %v210
    %v212 = vpop.f32.mrb[0].mxu0
    %213 = vmatprep.mubr.f32.mxu0 0.0
    %214 = vmatmul.mubr.f32.gmra.mrb[0].mxu0 %v142
    %v215 = vpop.f32.mrb[0].mxu0
    %v216 = vadd.f32 %v137, %v215
    %v217 = vpop.f32.mrb[0].mxu0
    %218 = vdwg.mxu0
    %v219 = vadd.f32 %v211, %v216
    %v220 = vrot.slane %v219, 4
    %v221 = vadd.f32 %v219, %v220
    %v222 = vrot.slane %v221, 2
    %v223 = vadd.f32 %v221, %v222
    %v224 = vrot.slane %v223, 1
    %v225 = vadd.f32 %v223, %v224
    %v226 = vmul.f32 %v225, 0.0625
    %v227 = vmul.f32 %v211, %v211
    %v228 = vmul.f32 %v216, %v216
    %v229 = vadd.f32 %v227, %v228
    %v230 = vrot.slane %v229, 4
    %v231 = vadd.f32 %v229, %v230
    %v232 = vrot.slane %v231, 2
    %v233 = vadd.f32 %v231, %v232
    %v234 = vrot.slane %v233, 1
    %v235 = vadd.f32 %v233, %v234
    %v236 = vmul.f32 %v235, 0.0625
    %v237 = vmul.f32 %v226, %v226
    %v238 = vsub.f32 %v236, %v237
    %v239 = vmax.f32 %v238, 0.0
    %v240 = vsub.f32 %v211, %v226
    %v241 = vsub.f32 %v216, %v226
    %v242 = vadd.f32 %v239, 1e-05
    %v243 = vrsqrt.pop %v242
    %v244 = vmul.f32 %v240, %v243
    %v245 = vmul.f32 %v241, %v243
    %v246 = vmul.f32 %v244, 0.5
    %v247 = vmul.f32 %v245, 0.5
    %v248 = vmul.f32 %v244, 0.70710677
    %v249 = vmul.f32 %v245, 0.70710677
    %vm250 = vcmp.ge.f32.partialorder %v248, 0.0
    %vm251 = vcmp.ge.f32.partialorder %v249, 0.0
    %v252 = vsel %vm250, 1.0, -1.0
    %v253 = vsel %vm251, 1.0, -1.0
    %v254 = vand.u32 2147483647, %v248
    %v255 = vand.u32 2147483647, %v249
    %v256 = vmul.f32 %v254, 0.3275911
    %v257 = vmul.f32 %v255, 0.3275911
    %v258 = vadd.f32 %v256, 1.0
    %v259 = vadd.f32 %v257, 1.0
    %v260 = vrcp.pop %v258
    %v261 = vmul.f32 1.0, %v260
    %v262 = vrcp.pop %v259
    %v263 = vmul.f32 1.0, %v262
    %v264 = vmul.f32 %v261, 1.0614054
    %v265 = vmul.f32 %v263, 1.0614054
    %v266 = vadd.f32 %v264, -1.4531521
    %v267 = vadd.f32 %v265, -1.4531521
    %v268 = vmul.f32 %v266, %v261
    %v269 = vmul.f32 %v267, %v263
    %v270 = vadd.f32 %v268, 1.4214138
    %v271 = vadd.f32 %v269, 1.4214138
    %v272 = vmul.f32 %v270, %v261
    %v273 = vmul.f32 %v271, %v263
    %v274 = vadd.f32 %v272, -0.28449672
    %v275 = vadd.f32 %v273, -0.28449672
    %v276 = vmul.f32 %v274, %v261
    %v277 = vmul.f32 %v275, %v263
    %v278 = vadd.f32 %v276, 0.2548296
    %v279 = vadd.f32 %v277, 0.2548296
    %v280 = vmul.f32 %v278, %v261
    %v281 = vmul.f32 %v279, %v263
    %v282 = vsub.f32 0.0, %v254
    %v283 = vsub.f32 0.0, %v255
    %v284 = vmul.f32 %v282, %v254
    %v285 = vmul.f32 %v283, %v255
    %v286 = vmul.f32 %v284, 1.442695
    %v287 = vpow.pop %v286
    %v288 = vmul.f32 %v285, 1.442695
    %v289 = vpow.pop %v288
    %v290 = vmul.f32 %v280, %v287
    %v291 = vmul.f32 %v281, %v289
    %v292 = vsub.f32 1.0, %v290
    %v293 = vsub.f32 1.0, %v291
    %v294 = vmul.f32 %v252, %v292
    %v295 = vmul.f32 %v253, %v293
    %v296 = vadd.f32 %v294, 1.0
    %v297 = vadd.f32 %v295, 1.0
    %v298 = vmul.f32 %v246, %v296
    %v299 = vmul.f32 %v247, %v297
    %v300 = vlaneseq
    %v301 = vshrl.u32 %v300, 7
    %v302 = vsub.s32 1, %v301
    %v303 = vrot.slane %v101, %v302
    %304 = vmatprep.subr.mxu0 0.0
    %305 = vmatpush1.msra.mxu0 %v53
    %306 = vmatprep.subr.mxu0 0.0
    %307 = vmatpush1.msra.mxu0 %v54
    %308 = vmatprep.subr.mxu0 0.0
    %309 = vmatpush1.msra.mxu0 %v55
    %310 = vmatprep.subr.mxu0 0.0
    %311 = vmatpush1.msra.mxu0 %v56
    %312 = vmatprep.subr.mxu0 0.0
    %313 = vmatpush1.msra.mxu0 %v57
    %314 = vmatprep.subr.mxu0 0.0
    %315 = vmatpush1.msra.mxu0 %v58
    %316 = vmatprep.subr.mxu0 0.0
    %317 = vmatpush1.msra.mxu0 %v59
    %318 = vmatprep.subr.mxu0 0.0
    %319 = vmatpush1.msra.mxu0 %v60
    %320 = vmatprep.subr.mxu0 0.0
    %321 = vmatpush1.msra.mxu0 %v61
    %322 = vmatprep.subr.mxu0 0.0
    %323 = vmatpush1.msra.mxu0 %v62
    %324 = vmatprep.subr.mxu0 0.0
    %325 = vmatpush1.msra.mxu0 %v63
    %326 = vmatprep.subr.mxu0 0.0
    %327 = vmatpush1.msra.mxu0 %v64
    %328 = vmatprep.subr.mxu0 0.0
    %329 = vmatpush1.msra.mxu0 %v65
    %330 = vmatprep.subr.mxu0 0.0
    %331 = vmatpush1.msra.mxu0 %v66
    %332 = vmatprep.subr.mxu0 0.0
    %333 = vmatpush1.msra.mxu0 %v67
    %334 = vmatprep.subr.mxu0 0.0
    %335 = vmatpush1.msra.mxu0 %v68
    %336 = vmatprep.subr.mxu0 0.0
    %337 = vmatpush1.msra.mxu0 0.0
    %338 = vmatprep.subr.mxu0 0.0
    %339 = vmatpush1.msra.mxu0 0.0
    %340 = vmatprep.subr.mxu0 0.0
    %341 = vmatpush1.msra.mxu0 0.0
    %342 = vmatprep.subr.mxu0 0.0
    %343 = vmatpush1.msra.mxu0 0.0
    %344 = vmatprep.subr.mxu0 0.0
    %345 = vmatpush1.msra.mxu0 0.0
    %346 = vmatprep.subr.mxu0 0.0
    %347 = vmatpush1.msra.mxu0 0.0
    %348 = vmatprep.subr.mxu0 0.0
    %349 = vmatpush1.msra.mxu0 0.0
    %350 = vmatprep.subr.mxu0 0.0
    %351 = vmatpush1.msra.mxu0 0.0
    %352 = vmatprep.subr.mxu0 0.0
    %353 = vmatpush1.msra.mxu0 0.0
    %354 = vmatprep.subr.mxu0 0.0
    %355 = vmatpush1.msra.mxu0 0.0
    %356 = vmatprep.subr.mxu0 0.0
    %357 = vmatpush1.msra.mxu0 0.0
    %358 = vmatprep.subr.mxu0 0.0
    %359 = vmatpush1.msra.mxu0 0.0
    %360 = vmatprep.subr.mxu0 0.0
    %361 = vmatpush1.msra.mxu0 0.0
    %362 = vmatprep.subr.mxu0 0.0
    %363 = vmatpush1.msra.mxu0 0.0
    %364 = vmatprep.subr.mxu0 0.0
    %365 = vmatpush1.msra.mxu0 0.0
    %366 = vmatprep.subr.mxu0 0.0
    %367 = vmatpush1.msra.mxu0 0.0
    %368 = vmatprep.mubr.f32.mxu0 0.0
    %369 = vmatmul.mubr.f32.gmra.mrb[0].mxu0 %v298
    %v370 = vpop.f32.mrb[0].mxu0
    %v371 = vadd.f32 %v303, %v370
    %v372 = vpop.f32.mrb[0].mxu0
    %373 = vmatprep.mubr.f32.mxu0 0.0
    %374 = vmatmul.mubr.f32.gmra.mrb[0].mxu0 %v299
    %v375 = vpop.f32.mrb[0].mxu0
    %v376 = vadd.f32 %v303, %v375
    %v377 = vpop.f32.mrb[0].mxu0
    %378 = vdwg.mxu0
    %v379 = vadd.f32 %v371, %v376
    %v380 = vrot.slane %v379, 4
    %v381 = vadd.f32 %v379, %v380
    %v382 = vrot.slane %v381, 2
    %v383 = vadd.f32 %v381, %v382
    %v384 = vrot.slane %v383, 1
    %v385 = vadd.f32 %v383, %v384
    %v386 = vmul.f32 %v385, 0.0625
    %v387 = vmul.f32 %v371, %v371
    %v388 = vmul.f32 %v376, %v376
    %v389 = vadd.f32 %v387, %v388
    %v390 = vrot.slane %v389, 4
    %v391 = vadd.f32 %v389, %v390
    %v392 = vrot.slane %v391, 2
    %v393 = vadd.f32 %v391, %v392
    %v394 = vrot.slane %v393, 1
    %v395 = vadd.f32 %v393, %v394
    %v396 = vmul.f32 %v395, 0.0625
    %v397 = vmul.f32 %v386, %v386
    %v398 = vsub.f32 %v396, %v397
    %v399 = vmax.f32 %v398, 0.0
    %v400 = vsub.f32 %v371, %v386
    %v401 = vsub.f32 %v376, %v386
    %v402 = vadd.f32 %v399, 1e-05
    %v403 = vrsqrt.pop %v402
    %v404 = vmul.f32 %v400, %v403
    %v405 = vmul.f32 %v401, %v403
    %v406 = vxor.u32 %v404, 2147483648
    %v407 = vxor.u32 %v405, 2147483648
    %v408 = vmul.f32 %v406, 1.442695
    %v409 = vpow.pop %v408
    %v410 = vmul.f32 %v407, 1.442695
    %v411 = vpow.pop %v410
    %v412 = vadd.f32 %v409, 1.0
    %v413 = vadd.f32 %v411, 1.0
    %v414 = vrcp.pop %v412
    %v415 = vmul.f32 1.0, %v414
    %v416 = vrcp.pop %v413
    %v417 = vmul.f32 1.0, %v416
    %vm418 = vcmask 130048
    %419 = vst.msk [vmem:[#allocation8] sm:$0xff] %vm418, %v415
    %420 = vst.msk [vmem:[#allocation8 + $0x8] sm:$0xff] %vm418, %v417
    %v421 = vlaneseq
    %v422 = vshrl.u32 %v421, 7
    %v423 = vsub.s32 2, %v422
    %v424 = vrot.slane %v101, %v423
    %425 = vmatprep.subr.mxu0 0.0
    %426 = vmatpush1.msra.mxu0 %v69
    %427 = vmatprep.subr.mxu0 0.0
    %428 = vmatpush1.msra.mxu0 %v70
    %429 = vmatprep.subr.mxu0 0.0
    %430 = vmatpush1.msra.mxu0 %v71
    %431 = vmatprep.subr.mxu0 0.0
    %432 = vmatpush1.msra.mxu0 %v72
    %433 = vmatprep.subr.mxu0 0.0
    %434 = vmatpush1.msra.mxu0 %v73
    %435 = vmatprep.subr.mxu0 0.0
    %436 = vmatpush1.msra.mxu0 %v74
    %437 = vmatprep.subr.mxu0 0.0
    %438 = vmatpush1.msra.mxu0 %v75
    %439 = vmatprep.subr.mxu0 0.0
    %440 = vmatpush1.msra.mxu0 %v76
    %441 = vmatprep.subr.mxu0 0.0
    %442 = vmatpush1.msra.mxu0 %v77
    %443 = vmatprep.subr.mxu0 0.0
    %444 = vmatpush1.msra.mxu0 %v78
    %445 = vmatprep.subr.mxu0 0.0
    %446 = vmatpush1.msra.mxu0 %v79
    %447 = vmatprep.subr.mxu0 0.0
    %448 = vmatpush1.msra.mxu0 %v80
    %449 = vmatprep.subr.mxu0 0.0
    %450 = vmatpush1.msra.mxu0 %v81
    %451 = vmatprep.subr.mxu0 0.0
    %452 = vmatpush1.msra.mxu0 %v82
    %453 = vmatprep.subr.mxu0 0.0
    %454 = vmatpush1.msra.mxu0 %v83
    %455 = vmatprep.subr.mxu0 0.0
    %456 = vmatpush1.msra.mxu0 %v84
    %457 = vmatprep.subr.mxu0 0.0
    %458 = vmatpush1.msra.mxu0 0.0
    %459 = vmatprep.subr.mxu0 0.0
    %460 = vmatpush1.msra.mxu0 0.0
    %461 = vmatprep.subr.mxu0 0.0
    %462 = vmatpush1.msra.mxu0 0.0
    %463 = vmatprep.subr.mxu0 0.0
    %464 = vmatpush1.msra.mxu0 0.0
    %465 = vmatprep.subr.mxu0 0.0
    %466 = vmatpush1.msra.mxu0 0.0
    %467 = vmatprep.subr.mxu0 0.0
    %468 = vmatpush1.msra.mxu0 0.0
    %469 = vmatprep.subr.mxu0 0.0
    %470 = vmatpush1.msra.mxu0 0.0
    %471 = vmatprep.subr.mxu0 0.0
    %472 = vmatpush1.msra.mxu0 0.0
    %473 = vmatprep.subr.mxu0 0.0
    %474 = vmatpush1.msra.mxu0 0.0
    %475 = vmatprep.subr.mxu0 0.0
    %476 = vmatpush1.msra.mxu0 0.0
    %477 = vmatprep.subr.mxu0 0.0
    %478 = vmatpush1.msra.mxu0 0.0
    %479 = vmatprep.subr.mxu0 0.0
    %480 = vmatpush1.msra.mxu0 0.0
    %481 = vmatprep.subr.mxu0 0.0
    %482 = vmatpush1.msra.mxu0 0.0
    %483 = vmatprep.subr.mxu0 0.0
    %484 = vmatpush1.msra.mxu0 0.0
    %485 = vmatprep.subr.mxu0 0.0
    %486 = vmatpush1.msra.mxu0 0.0
    %487 = vmatprep.subr.mxu0 0.0
    %488 = vmatpush1.msra.mxu0 0.0
    %489 = vmatprep.mubr.f32.mxu0 0.0
    %490 = vmatmul.mubr.f32.gmra.mrb[0].mxu0 %v371
    %v491 = vpop.f32.mrb[0].mxu0
    %v492 = vadd.f32 %v424, %v491
    %v493 = vpop.f32.mrb[0].mxu0
    %494 = vmatprep.mubr.f32.mxu0 0.0
    %495 = vmatmul.mubr.f32.gmra.mrb[0].mxu0 %v376
    %v496 = vpop.f32.mrb[0].mxu0
    %v497 = vadd.f32 %v424, %v496
    %v498 = vpop.f32.mrb[0].mxu0
    %499 = vdwg.mxu0
    %v500 = vadd.f32 %v492, %v497
    %v501 = vrot.slane %v500, 4
    %v502 = vadd.f32 %v500, %v501
    %v503 = vrot.slane %v502, 2
    %v504 = vadd.f32 %v502, %v503
    %v505 = vrot.slane %v504, 1
    %v506 = vadd.f32 %v504, %v505
    %v507 = vmul.f32 %v506, 0.0625
    %v508 = vmul.f32 %v492, %v492
    %v509 = vmul.f32 %v497, %v497
    %v510 = vadd.f32 %v508, %v509
    %v511 = vrot.slane %v510, 4
    %v512 = vadd.f32 %v510, %v511
    %v513 = vrot.slane %v512, 2
    %v514 = vadd.f32 %v512, %v513
    %v515 = vrot.slane %v514, 1
    %v516 = vadd.f32 %v514, %v515
    %v517 = vmul.f32 %v516, 0.0625
    %v518 = vmul.f32 %v507, %v507
    %v519 = vsub.f32 %v517, %v518
    %v520 = vmax.f32 %v519, 0.0
    %v521 = vsub.f32 %v492, %v507
    %v522 = vsub.f32 %v497, %v507
    %v523 = vadd.f32 %v520, 1e-05
    %v524 = vrsqrt.pop %v523
    %v525 = vmul.f32 %v521, %v524
    %v526 = vmul.f32 %v522, %v524
    %v527 = vmul.f32 %v525, 0.5
    %v528 = vmul.f32 %v526, 0.5
    %v529 = vmul.f32 %v525, 0.70710677
    %v530 = vmul.f32 %v526, 0.70710677
    %vm531 = vcmp.ge.f32.partialorder %v529, 0.0
    %vm532 = vcmp.ge.f32.partialorder %v530, 0.0
    %v533 = vsel %vm531, 1.0, -1.0
    %v534 = vsel %vm532, 1.0, -1.0
    %v535 = vand.u32 2147483647, %v529
    %v536 = vand.u32 2147483647, %v530
    %v537 = vmul.f32 %v535, 0.3275911
    %v538 = vmul.f32 %v536, 0.3275911
    %v539 = vadd.f32 %v537, 1.0
    %v540 = vadd.f32 %v538, 1.0
    %v541 = vrcp.pop %v539
    %v542 = vmul.f32 1.0, %v541
    %v543 = vrcp.pop %v540
    %v544 = vmul.f32 1.0, %v543
    %v545 = vmul.f32 %v542, 1.0614054
    %v546 = vmul.f32 %v544, 1.0614054
    %v547 = vadd.f32 %v545, -1.4531521
    %v548 = vadd.f32 %v546, -1.4531521
    %v549 = vmul.f32 %v547, %v542
    %v550 = vmul.f32 %v548, %v544
    %v551 = vadd.f32 %v549, 1.4214138
    %v552 = vadd.f32 %v550, 1.4214138
    %v553 = vmul.f32 %v551, %v542
    %v554 = vmul.f32 %v552, %v544
    %v555 = vadd.f32 %v553, -0.28449672
    %v556 = vadd.f32 %v554, -0.28449672
    %v557 = vmul.f32 %v555, %v542
    %v558 = vmul.f32 %v556, %v544
    %v559 = vadd.f32 %v557, 0.2548296
    %v560 = vadd.f32 %v558, 0.2548296
    %v561 = vmul.f32 %v559, %v542
    %v562 = vmul.f32 %v560, %v544
    %v563 = vsub.f32 0.0, %v535
    %v564 = vsub.f32 0.0, %v536
    %v565 = vmul.f32 %v563, %v535
    %v566 = vmul.f32 %v564, %v536
    %v567 = vmul.f32 %v565, 1.442695
    %v568 = vpow.pop %v567
    %v569 = vmul.f32 %v566, 1.442695
    %v570 = vpow.pop %v569
    %v571 = vmul.f32 %v561, %v568
    %v572 = vmul.f32 %v562, %v570
    %v573 = vsub.f32 1.0, %v571
    %v574 = vsub.f32 1.0, %v572
    %v575 = vmul.f32 %v533, %v573
    %v576 = vmul.f32 %v534, %v574
    %v577 = vadd.f32 %v575, 1.0
    %v578 = vadd.f32 %v576, 1.0
    %v579 = vmul.f32 %v527, %v577
    %v580 = vmul.f32 %v528, %v578
    %v581 = vlaneseq
    %v582 = vshrl.u32 %v581, 7
    %v583 = vsub.s32 3, %v582
    %v584 = vrot.slane %v101, %v583
    %585 = vmatprep.subr.mxu0 0.0
    %586 = vmatpush1.msra.mxu0 %v85
    %587 = vmatprep.subr.mxu0 0.0
    %588 = vmatpush1.msra.mxu0 %v86
    %589 = vmatprep.subr.mxu0 0.0
    %590 = vmatpush1.msra.mxu0 %v87
    %591 = vmatprep.subr.mxu0 0.0
    %592 = vmatpush1.msra.mxu0 %v88
    %593 = vmatprep.subr.mxu0 0.0
    %594 = vmatpush1.msra.mxu0 %v89
    %595 = vmatprep.subr.mxu0 0.0
    %596 = vmatpush1.msra.mxu0 %v90
    %597 = vmatprep.subr.mxu0 0.0
    %598 = vmatpush1.msra.mxu0 %v91
    %599 = vmatprep.subr.mxu0 0.0
    %600 = vmatpush1.msra.mxu0 %v92
    %601 = vmatprep.subr.mxu0 0.0
    %602 = vmatpush1.msra.mxu0 %v93
    %603 = vmatprep.subr.mxu0 0.0
    %604 = vmatpush1.msra.mxu0 %v94
    %605 = vmatprep.subr.mxu0 0.0
    %606 = vmatpush1.msra.mxu0 %v95
    %607 = vmatprep.subr.mxu0 0.0
    %608 = vmatpush1.msra.mxu0 %v96
    %609 = vmatprep.subr.mxu0 0.0
    %610 = vmatpush1.msra.mxu0 %v97
    %611 = vmatprep.subr.mxu0 0.0
    %612 = vmatpush1.msra.mxu0 %v98
    %613 = vmatprep.subr.mxu0 0.0
    %614 = vmatpush1.msra.mxu0 %v99
    %615 = vmatprep.subr.mxu0 0.0
    %616 = vmatpush1.msra.mxu0 %v100
    %617 = vmatprep.subr.mxu0 0.0
    %618 = vmatpush1.msra.mxu0 0.0
    %619 = vmatprep.subr.mxu0 0.0
    %620 = vmatpush1.msra.mxu0 0.0
    %621 = vmatprep.subr.mxu0 0.0
    %622 = vmatpush1.msra.mxu0 0.0
    %623 = vmatprep.subr.mxu0 0.0
    %624 = vmatpush1.msra.mxu0 0.0
    %625 = vmatprep.subr.mxu0 0.0
    %626 = vmatpush1.msra.mxu0 0.0
    %627 = vmatprep.subr.mxu0 0.0
    %628 = vmatpush1.msra.mxu0 0.0
    %629 = vmatprep.subr.mxu0 0.0
    %630 = vmatpush1.msra.mxu0 0.0
    %631 = vmatprep.subr.mxu0 0.0
    %632 = vmatpush1.msra.mxu0 0.0
    %633 = vmatprep.subr.mxu0 0.0
    %634 = vmatpush1.msra.mxu0 0.0
    %635 = vmatprep.subr.mxu0 0.0
    %636 = vmatpush1.msra.mxu0 0.0
    %637 = vmatprep.subr.mxu0 0.0
    %638 = vmatpush1.msra.mxu0 0.0
    %639 = vmatprep.subr.mxu0 0.0
    %640 = vmatpush1.msra.mxu0 0.0
    %641 = vmatprep.subr.mxu0 0.0
    %642 = vmatpush1.msra.mxu0 0.0
    %643 = vmatprep.subr.mxu0 0.0
    %644 = vmatpush1.msra.mxu0 0.0
    %645 = vmatprep.subr.mxu0 0.0
    %646 = vmatpush1.msra.mxu0 0.0
    %647 = vmatprep.subr.mxu0 0.0
    %648 = vmatpush1.msra.mxu0 0.0
    %649 = vmatprep.mubr.f32.mxu0 0.0
    %650 = vmatmul.mubr.f32.gmra.mrb[0].mxu0 %v579
    %v651 = vpop.f32.mrb[0].mxu0
    %v652 = vadd.f32 %v584, %v651
    %v653 = vpop.f32.mrb[0].mxu0
    %654 = vmatprep.mubr.f32.mxu0 0.0
    %655 = vmatmul.mubr.f32.gmra.mrb[0].mxu0 %v580
    %v656 = vpop.f32.mrb[0].mxu0
    %v657 = vadd.f32 %v584, %v656
    %v658 = vpop.f32.mrb[0].mxu0
    %659 = vdwg.mxu0
    %v660 = vsub.f32 %v652, %v43
    %v661 = vsub.f32 %v657, %v44
    %v662 = vmul.f32 %v660, %v660
    %v663 = vmul.f32 %v661, %v661
    %v664 = vsel %vm102, %v662, 0.0
    %v665 = vsel %vm102, %v663, 0.0
    %v666 = vadd.f32 %v664, %v665
    %667 = vadd.xlane.f32.xlu0 %v666
    %v668 = vpop.xlane.xlu0 %667
    %v669 = vrot.slane %v668, 4
    %v670 = vadd.f32 %v668, %v669
    %v671 = vrot.slane %v670, 2
    %v672 = vadd.f32 %v670, %v671
    %v673 = vrot.slane %v672, 1
    %v674 = vadd.f32 %v672, %v673
    %s675 = vtos %v674
    %v676 = vrcp.pop 1024.0
    %s677 = vtos %v676
    %s678 = smul.f32 %s675, %s677
    %s679 = scalar_lea.smem [#allocation9], 0
    %680 = sst [smem:[%s679]] %s678
    // Predicated region
    $region18: #{tpu_custom_call.1} parent=1 // pred_check
      _
    $region19: #{tpu_custom_call.1} parent=1 // pred_check_branch
      %682 = sbr.rel (0) target = $region21
    $region20: #{tpu_custom_call.1} parent=1 // pred_region
      %s684 = ssub.s32 256, 256
      %685 = vsyncadd [#allocation4], %s684
      %s686 = sshll.u32 [#allocation8], 4
      %s687 = int_to_ptr.vmem [resolvable:$true] %s686
      %692 = dma.vmem_to_hbm [thread:$0]  %s687, 256, %s2, [#allocation4], 128, 128, 8
    $region21: #{tpu_custom_call.1} parent=1 // pred_fallthru
      _
    // Predicated region
    $region22: #{tpu_custom_call.1} parent=1 // pred_check
      _
    $region23: #{tpu_custom_call.1} parent=1 // pred_check_branch
      %694 = sbr.rel (0) target = $region25
    $region24: #{tpu_custom_call.1} parent=1 // pred_region
      %s696 = ssub.s32 16, 16
      %697 = vsyncadd [#allocation5], %s696
      %700 = dma.smem_to_hbm [#allocation9], 16, %s3, [#allocation5]
    $region25: #{tpu_custom_call.1} parent=1 // pred_fallthru
      _
    // Predicated region
    $region26: #{tpu_custom_call.1} parent=1 // pred_check
      _
    $region27: #{tpu_custom_call.1} parent=1 // pred_check_branch
      %702 = sbr.rel (0) target = $region29
    $region28: #{tpu_custom_call.1} parent=1 // pred_region
      %703 = dma.done [#allocation4], 256
    $region29: #{tpu_custom_call.1} parent=1 // pred_fallthru
      _
    // Predicated region
    $region30: #{tpu_custom_call.1} parent=1 // pred_check
      _
    $region31: #{tpu_custom_call.1} parent=1 // pred_check_branch
      %705 = sbr.rel (0) target = $region33
    $region32: #{tpu_custom_call.1} parent=1 // pred_region
      %706 = dma.done [#allocation5], 16
    $region33: #{tpu_custom_call.1} parent=1 // pred_fallthru
      _
    %707 = sfence
    %708 = vsyncpa [#allocation3], 1
    %709 = vsyncpa [#allocation7], 1
    %710 = vsyncpa [#allocation4], 1
    %711 = vsyncpa [#allocation5], 1

</llo_original>
